<compile_context>
chip_gen: v6e
topology: v6e:2x2x1
jax: 0.10.0
libtpu: 0.0.40
codegen_flags: <defaults>
</compile_context>

<pallas_src>
import math

import jax
import jax.numpy as jnp
from jax.experimental import pallas as pl
from jax.experimental.pallas import tpu as pltpu

_INV_SQRT2 = 1.0 / math.sqrt(2.0)


def _round_up(x: int, m: int) -> int:
    return ((x + m - 1) // m) * m


def _vmem_capacity_bytes() -> int:
    """Physical per-core VMEM; conservative 64 MiB fallback (v7x-sized)."""
    try:
        return int(pltpu.get_tpu_info().vmem_capacity_bytes)
    except Exception:
        return 64 << 20


def _gelu_exact(y):
    # Exact (erf-based) GELU — matches torch / HF "gelu". erf runs on EUP/VPU
    # slots that have slack while the matmul is MXU-bound.
    return 0.5 * y * (1.0 + jax.lax.erf(y * _INV_SQRT2))


def _pcl_intermediate_kernel(x_ref, w_ref, b_ref, o_ref):
    """Fused dense + bias + erf-GELU on one (tm, tn) output tile. Full K."""
    y = jnp.dot(x_ref[...], w_ref[...], preferred_element_type=jnp.float32)
    y = y + b_ref[...]
    o_ref[...] = _gelu_exact(y).astype(o_ref.dtype)


def _pcl_intermediate_kernel_ktiled(x_ref, w_ref, b_ref, o_ref, acc_ref):
    """Same, but K is a grid axis (innermost, 'arbitrary') with f32 accumulator."""
    k = pl.program_id(2)

    @pl.when(k == 0)
    def _():
        acc_ref[...] = jnp.zeros_like(acc_ref)

    acc_ref[...] += jnp.dot(x_ref[...], w_ref[...],
                            preferred_element_type=jnp.float32)

    @pl.when(k == pl.num_programs(2) - 1)
    def _():
        y = acc_ref[...] + b_ref[...]
        o_ref[...] = _gelu_exact(y).astype(o_ref.dtype)


def pcl_intermediate(hidden_states, weight_t, bias, *, tm=512, tn=512,
                     k_tile=None, use_bf16_matmul=False):
    """gelu(hidden_states @ weight_t + bias) via a fused Pallas TPU kernel.

    hidden_states: (batch, seq, hidden)   float32
    weight_t:      (hidden, intermediate) float32 (torch Linear weight, transposed)
    bias:          (intermediate,)        float32
    k_tile:        optional explicit K tile (must divide hidden, multiple of 128)
    use_bf16_matmul: cast x/W to bf16 for the MXU (f32 accumulation). Opt-in,
                     changes numerics slightly vs the f32 reference.
    """
    batch, seq, hidden = hidden_states.shape
    k_dim, inter = weight_t.shape
    assert k_dim == hidden, "weight_t must be (hidden, intermediate)"
    m = batch * seq
    out_dtype = hidden_states.dtype
    out_bytes = jnp.dtype(out_dtype).itemsize

    x2d = hidden_states.reshape(m, hidden)
    w2d = weight_t
    b2d = bias.reshape(1, inter).astype(jnp.float32)

    if use_bf16_matmul:
        # TODO(synk): ideally the weight is pre-cast to bf16 once at init time.
        x2d = x2d.astype(jnp.bfloat16)
        w2d = w2d.astype(jnp.bfloat16)
    in_bytes = jnp.dtype(x2d.dtype).itemsize

    # --- tile sizes: sublane-aligned tm (x8), lane-dense tn (x128) ----------
    tm_eff = max(8, min(int(tm), _round_up(m, 8)))
    tm_eff = _round_up(tm_eff, 8)
    tn_eff = max(128, min(int(tn), _round_up(inter, 128)))
    tn_eff = _round_up(tn_eff, 128)

    # --- K tiling decision ---------------------------------------------------
    tk_eff = None
    if k_tile is not None:
        if k_tile % 128 == 0 and hidden % k_tile == 0 and k_tile < hidden:
            tk_eff = int(k_tile)
    elif hidden >= 4096:
        for cand in (2048, 1024, 512, 256, 128):
            if hidden % cand == 0:
                tk_eff = cand
                break
    k_block = tk_eff if tk_eff is not None else hidden

    # --- VMEM budget: shrink tm until the double-buffered set fits ----------
    cap = int(0.75 * _vmem_capacity_bytes())   # leave ~25% headroom for compiler scratch
    headroom = 4 << 20

    def _working_set(tm_, tn_):
        ws = 2 * ((tm_ * k_block + k_block * tn_) * in_bytes
                  + tn_ * 4 + tm_ * tn_ * out_bytes)
        if tk_eff is not None:
            ws += tm_ * tn_ * 4  # f32 accumulator scratch
        return ws

    while _working_set(tm_eff, tn_eff) + headroom > cap and tm_eff > 8:
        tm_eff = max(8, _round_up(tm_eff // 2, 8))

    # --- grid, making sure there are >= 2 parallel work units (v7x 2 TCs) ---
    grid_m = pl.cdiv(m, tm_eff)
    grid_n = pl.cdiv(inter, tn_eff)
    if grid_m * grid_n < 2:
        if tn_eff >= 256:
            tn_eff //= 2
        elif tm_eff >= 16:
            tm_eff = max(8, _round_up(tm_eff // 2, 8))
        grid_m = pl.cdiv(m, tm_eff)
        grid_n = pl.cdiv(inter, tn_eff)

    vmem_limit = int(max(min(_working_set(tm_eff, tn_eff) + headroom, cap), 16 << 20))

    # --- specs ----------------------------------------------------------------
    if tk_eff is None:
        # Pick the grid order that re-streams the cheaper operand.
        stream_w = grid_m * hidden * inter + m * hidden   # N innermost: weight restreams
        stream_x = grid_n * m * hidden + hidden * inter   # M innermost: activations restream
        if stream_w <= stream_x:
            grid = (grid_m, grid_n)
            x_map = lambda i, j: (i, 0)
            w_map = lambda i, j: (0, j)
            b_map = lambda i, j: (0, j)
            o_map = lambda i, j: (i, j)
        else:
            grid = (grid_n, grid_m)
            x_map = lambda j, i: (i, 0)
            w_map = lambda j, i: (0, j)
            b_map = lambda j, i: (0, j)
            o_map = lambda j, i: (i, j)
        in_specs = [
            pl.BlockSpec((tm_eff, hidden), x_map),
            pl.BlockSpec((hidden, tn_eff), w_map),
            pl.BlockSpec((1, tn_eff), b_map),
        ]
        out_spec = pl.BlockSpec((tm_eff, tn_eff), o_map)
        scratch = []
        kernel = _pcl_intermediate_kernel
        dims = ("parallel", "parallel")
    else:
        grid_k = hidden // tk_eff
        grid = (grid_m, grid_n, grid_k)
        in_specs = [
            pl.BlockSpec((tm_eff, tk_eff), lambda i, j, k: (i, k)),
            pl.BlockSpec((tk_eff, tn_eff), lambda i, j, k: (k, j)),
            pl.BlockSpec((1, tn_eff), lambda i, j, k: (0, j)),
        ]
        out_spec = pl.BlockSpec((tm_eff, tn_eff), lambda i, j, k: (i, j))
        scratch = [pltpu.VMEM((tm_eff, tn_eff), jnp.float32)]
        kernel = _pcl_intermediate_kernel_ktiled
        dims = ("parallel", "parallel", "arbitrary")

    cost = pl.CostEstimate(
        flops=2 * m * hidden * inter,
        transcendentals=m * inter,
        bytes_accessed=(m * hidden + hidden * inter) * in_bytes
                       + inter * 4 + m * inter * out_bytes,
    )

    out = pl.pallas_call(
        kernel,
        out_shape=jax.ShapeDtypeStruct((m, inter), out_dtype),
        grid=grid,
        in_specs=in_specs,
        out_specs=out_spec,
        scratch_shapes=scratch,
        compiler_params=pltpu.CompilerParams(
            dimension_semantics=dims,
            vmem_limit_bytes=vmem_limit,
        ),
        cost_estimate=cost,
    )(x2d, w2d, b2d)

    return out.reshape(batch, seq, inter)


# ----------------------------- test harness ----------------------------------

def _reference(hidden_states, weight_t, bias):
    y = jnp.einsum("bsh,hi->bsi", hidden_states, weight_t) + bias
    return 0.5 * y * (1.0 + jax.lax.erf(y / jnp.sqrt(2.0)))


def _make_inputs(key, batch, seq, hidden, inter):
    k_x, k_w, k_b = jax.random.split(key, 3)
    hidden_states = jax.random.normal(k_x, (batch, seq, hidden), dtype=jnp.float32)
    bound = 1.0 / math.sqrt(hidden)
    # Torch Linear weight is (intermediate, hidden); we keep it transposed.
    weight_t = jax.random.uniform(
        k_w, (hidden, inter), minval=-bound, maxval=bound, dtype=jnp.float32
    )
    bias = jax.random.uniform(
        k_b, (inter,), minval=-bound, maxval=bound, dtype=jnp.float32
    )
    return hidden_states, weight_t, bias


if __name__ == "__main__":
    key = jax.random.PRNGKey(0)
    k1, k2, k3 = jax.random.split(key, 3)

    # 1) Small config consistent with the module: hidden_size=32, intermediate=64.
    batch, seq, hidden, inter = 2, 8, 32, 64
    hs, w_t, b = _make_inputs(k1, batch, seq, hidden, inter)
    out = jax.block_until_ready(pcl_intermediate(hs, w_t, b))
    ref = _reference(hs, w_t, b)
    assert out.shape == (batch, seq, inter)
    assert jnp.allclose(out, ref, atol=1e-5, rtol=1e-5), "mismatch (small)"

    # 2) Multi-tile + ragged-N path (no padding, masked edge blocks).
    batch2, seq2, hidden2, inter2 = 2, 160, 128, 640
    hs2, w_t2, b2 = _make_inputs(k2, batch2, seq2, hidden2, inter2)
    out2 = jax.block_until_ready(pcl_intermediate(hs2, w_t2, b2))
    ref2 = _reference(hs2, w_t2, b2)
    assert out2.shape == (batch2, seq2, inter2)
    assert jnp.allclose(out2, ref2, atol=1e-4, rtol=1e-4), "mismatch (tiled)"

    # 2b) Same shape through the opt-in bf16 MXU path (looser tolerance).
    out2b = jax.block_until_ready(
        pcl_intermediate(hs2, w_t2, b2, use_bf16_matmul=True))
    assert jnp.allclose(out2b, ref2, atol=5e-2, rtol=5e-2), "mismatch (bf16)"

    # 3) Explicit K-tiled path (accumulator + pl.when init/finalize).
    batch3, seq3, hidden3, inter3 = 2, 64, 256, 512
    hs3, w_t3, b3 = _make_inputs(k3, batch3, seq3, hidden3, inter3)
    out3 = jax.block_until_ready(pcl_intermediate(hs3, w_t3, b3, k_tile=128))
    ref3 = _reference(hs3, w_t3, b3)
    assert out3.shape == (batch3, seq3, inter3)
    assert jnp.allclose(out3, ref3, atol=1e-4, rtol=1e-4), "mismatch (k-tiled)"

    print("KERNEL_OK")
</pallas_src>

<mosaic_0001>
module attributes {stable_mosaic.version = 11 : i64} {
  func.func @_pcl_intermediate_kernel(%arg0: i32, %arg1: i32, %arg2: memref<8x32xf32, #tpu.memory_space<vmem>>, %arg3: memref<32x128xf32, #tpu.memory_space<vmem>>, %arg4: memref<1x128xf32, #tpu.memory_space<vmem>>, %arg5: memref<8x128xf32, #tpu.memory_space<vmem>>) attributes {dimension_semantics = [#tpu.dimension_semantics<parallel>, #tpu.dimension_semantics<parallel>], iteration_bounds = array<i64: 1, 2>, scalar_prefetch = 0 : i64, scratch_operands = 0 : i64, tpu.core_type = #tpu.core_type<tc>, window_params = [{transform_indices = @transform_0, window_bounds = array<i64: 8, 32>}, {transform_indices = @transform_1, window_bounds = array<i64: 32, 128>}, {transform_indices = @transform_2, window_bounds = array<i64: 1, 128>}, {transform_indices = @transform_3, window_bounds = array<i64: 8, 128>}]} {
    %c0 = arith.constant 0 : index
    %c0_0 = arith.constant 0 : index
    %0 = vector.load %arg2[%c0, %c0_0] : memref<8x32xf32, #tpu.memory_space<vmem>>, vector<8x32xf32>
    %c0_1 = arith.constant 0 : index
    %c0_2 = arith.constant 0 : index
    %1 = vector.load %arg3[%c0_1, %c0_2] : memref<32x128xf32, #tpu.memory_space<vmem>>, vector<32x128xf32>
    %cst = arith.constant dense<0.000000e+00> : vector<8x128xf32>
    %2 = tpu.matmul %0, %1, %cst {dimension_numbers = #tpu.dot_dimension_numbers<[1], [0], [0], [1], [0, 0, 1, 1], [], []>} : vector<8x32xf32>, vector<32x128xf32>, vector<8x128xf32> -> vector<8x128xf32>
    %c0_3 = arith.constant 0 : index
    %c0_4 = arith.constant 0 : index
    %3 = vector.load %arg4[%c0_3, %c0_4] : memref<1x128xf32, #tpu.memory_space<vmem>>, vector<1x128xf32>
    %4 = vector.broadcast %3 : vector<1x128xf32> to vector<8x128xf32>
    %5 = arith.addf %2, %4 : vector<8x128xf32>
    %cst_5 = arith.constant 5.000000e-01 : f32
    %6 = vector.broadcast %cst_5 : f32 to vector<8x128xf32>
    %7 = arith.mulf %6, %5 : vector<8x128xf32>
    %cst_6 = arith.constant 0.707106769 : f32
    %8 = vector.broadcast %cst_6 : f32 to vector<8x128xf32>
    %9 = arith.mulf %5, %8 : vector<8x128xf32>
    %10 = math.erf %9 : vector<8x128xf32>
    %cst_7 = arith.constant 1.000000e+00 : f32
    %11 = vector.broadcast %cst_7 : f32 to vector<8x128xf32>
    %12 = arith.addf %11, %10 : vector<8x128xf32>
    %13 = arith.mulf %7, %12 : vector<8x128xf32>
    %c0_8 = arith.constant 0 : index
    %c0_9 = arith.constant 0 : index
    %14 = vector.load %arg5[%c0_8, %c0_9] : memref<8x128xf32, #tpu.memory_space<vmem>>, vector<8x128xf32>
    tpu.vector_store %arg5[%c0_8, %c0_9], %13 {strides = array<i32>} : memref<8x128xf32, #tpu.memory_space<vmem>>, vector<8x128xf32>,
    return
  }
  func.func @transform_0(%arg0: i32, %arg1: i32) -> (i32, i32) {
    %c0_i32 = arith.constant 0 : i32
    %c0_i32_0 = arith.constant 0 : i32
    return %arg1, %c0_i32 : i32, i32
  }
  func.func @transform_1(%arg0: i32, %arg1: i32) -> (i32, i32) {
    %c0_i32 = arith.constant 0 : i32
    %c0_i32_0 = arith.constant 0 : i32
    return %c0_i32, %arg0 : i32, i32
  }
  func.func @transform_2(%arg0: i32, %arg1: i32) -> (i32, i32) {
    %c0_i32 = arith.constant 0 : i32
    %c0_i32_0 = arith.constant 0 : i32
    return %c0_i32, %arg0 : i32, i32
  }
  func.func @transform_3(%arg0: i32, %arg1: i32) -> (i32, i32) {
    %c0_i32 = arith.constant 0 : i32
    return %arg1, %arg0 : i32, i32
  }
}

</mosaic_0001>

<llo_original>
// kernel: tpu_custom_call.1
$region0: #{tpu_custom_call.1}
  #allocation0 [shape = 'u32[]', space=smem, size = 0x4, offset = 0x4, fixed_abs, tag = 'smem constant byte address 0x4 - core index']
  #allocation1 [shape = 'u32[144,128]{1,0:T(1,128)}', space=vmem, size = 0x12000, scoped, tag = 'internal scratch']
  %s0 = inlined_call_operand.hbm [shape: f32[16,32], index: 0, kind: input, shape index: {}]
  %s1 = inlined_call_operand.hbm [shape: f32[32,64], index: 1, kind: input, shape index: {}]
  %s2 = inlined_call_operand.vmem [shape: f32[1,64], index: 2, kind: input, shape index: {}]
  %s3 = inlined_call_operand.hbm [shape: f32[16,64], index: 3, kind: output, shape index: {}]
  %s4 = sld [smem:[#allocation0]]
  $region53: #{tpu_custom_call.1} parent=0
    _
  %s6 = ssub.s32 1, %s4
  %s7 = scalar_select 0, %s6, %s4
  $region1: #{tpu_custom_call.1} parent=0
    #allocation2 [shape = 'u8[8192]{0}', space=vmem, size = 0x2000, scoped, tag = 'input window, operand 0']
    #allocation3 [shape = 's32[2]{0}', space=sflag, size = 0x8, scoped, tag = 'scoped memory for tpu_custom_call.1']
    #allocation4 [shape = 's32[2]{0}', space=sflag, size = 0x8, scoped, tag = 'scoped memory for tpu_custom_call.1']
    #allocation5 [shape = 'u8[16384]{0}', space=vmem, size = 0x4000, scoped, tag = 'input window, operand 1, single buffered']
    #allocation6 [shape = 's32[1]{0}', space=sflag, size = 0x4, scoped, tag = 'scoped memory for tpu_custom_call.1']
    #allocation7 [shape = 'u8[8192]{0}', space=vmem, size = 0x2000, scoped, tag = 'output window, operand 0']
    %8 = vsyncpa [#allocation3], 0
    %s9 = scalar_lea.sflag [#allocation3], 1
    %10 = vsyncpa %s9, 0
    %11 = vsyncpa [#allocation6], 0
    %12 = vsyncpa [#allocation4], 0
    %s13 = scalar_lea.sflag [#allocation4], 1
    %14 = vsyncpa %s13, 0
    loop: start=0, step=1, limit=4
    $region2: #{tpu_custom_call.1} parent=1 // loop_pre_header
      _
    $region3: #{tpu_custom_call.1} parent=1 // loop_header
      %s16 = sphi 0, %s20
      %p17 = scmp.ge.s32.totalorder %s16, 4
      %s23 = sphi 0, %s35
      %s24 = sphi 0, %s31
      %s25 = sphi 0, %s23
      %s26 = sphi 0, %s24
      %s27 = sphi 0, %s25
      %s28 = sphi 0, %s26
      %s38 = sphi 0, %s40
      %s41 = sphi 0, %s38
      %s42 = sphi 0, %s41
      %s58 = sphi 0, %s42
      %s64 = sphi 0, %s66
      %s67 = sphi 0, %s64
      %s68 = sphi 0, %s67
      %s84 = sphi 0, %s68
      %s90 = sphi 0, %s92
      %s93 = sphi 0, %s90
      %s94 = sphi 0, %s93
      %s110 = sphi 0, %s94
      %s118 = sphi 0, %s120
      %s121 = sphi 0, %s118
      %s122 = sphi 0, %s121
      %s138 = sphi 0, %s122
    $region4: #{tpu_custom_call.1} parent=1 // loop_header_branch
      %19 = sbr.rel (%p17) target = $region8
    $region5: #{tpu_custom_call.1} parent=1 // loop_body
      %s21 = ssub.s32 %s16, 1
      %s22 = ssub.s32 %s16, 2
      %s29 = sadd.s32 1, %s24
      %p30 = scmp.ge.s32.totalorder %s29, 2
      %s31 = scalar_select %p30, 0, %s29
      %s32 = sadd.s32 1, %s23
      %s33 = scalar_select %p30, %s32, %s23
      %p34 = scmp.ge.s32.totalorder %s33, 1
      %s35 = scalar_select %p34, 0, %s33
      %s36 = ssub.s32 %s24, %s31
      %p37 = scmp.eq.s32.totalorder %s36, 0
      %s39 = sadd.s32 %s38, 1
      %s40 = scalar_select %p37, %s38, %s39
      %p43 = pneg %p37
      %p44 = scmp.eq.s32.totalorder %s16, 1
      %p45 = por %p43, %p44
      %p46 = scmp.ne.s32.totalorder %s38, %s41
      %p47 = scmp.eq.s32.totalorder %s16, 0
      %p48 = por %p46, %p47
      %p49 = scmp.ne.s32.totalorder %s38, %s41
      %p50 = scmp.eq.s32.totalorder %s21, 1
      %p51 = por %p49, %p50
      %p52 = scmp.ne.s32.totalorder %s41, %s42
      %p53 = scmp.eq.s32.totalorder %s21, 0
      %p54 = por %p52, %p53
      %p55 = scmp.ne.s32.totalorder %s41, %s42
      %p56 = scmp.eq.s32.totalorder %s22, 1
      %p57 = por %p55, %p56
      %p59 = scmp.ne.s32.totalorder %s42, %s58
      %p60 = scmp.eq.s32.totalorder %s22, 0
      %p61 = por %p59, %p60
      %s62 = ssub.s32 %s23, %s35
      %p63 = scmp.eq.s32.totalorder %s62, 0
      %s65 = sadd.s32 %s64, 1
      %s66 = scalar_select %p63, %s64, %s65
      %p69 = pneg %p63
      %p70 = scmp.eq.s32.totalorder %s16, 1
      %p71 = por %p69, %p70
      %p72 = scmp.ne.s32.totalorder %s64, %s67
      %p73 = scmp.eq.s32.totalorder %s16, 0
      %p74 = por %p72, %p73
      %p75 = scmp.ne.s32.totalorder %s64, %s67
      %p76 = scmp.eq.s32.totalorder %s21, 1
      %p77 = por %p75, %p76
      %p78 = scmp.ne.s32.totalorder %s67, %s68
      %p79 = scmp.eq.s32.totalorder %s21, 0
      %p80 = por %p78, %p79
      %p81 = scmp.ne.s32.totalorder %s67, %s68
      %p82 = scmp.eq.s32.totalorder %s22, 1
      %p83 = por %p81, %p82
      %p85 = scmp.ne.s32.totalorder %s68, %s84
      %p86 = scmp.eq.s32.totalorder %s22, 0
      %p87 = por %p85, %p86
      %s88 = ssub.s32 %s23, %s35
      %p89 = scmp.eq.s32.totalorder %s88, 0
      %s91 = sadd.s32 %s90, 1
      %s92 = scalar_select %p89, %s90, %s91
      %p95 = pneg %p89
      %p96 = scmp.eq.s32.totalorder %s16, 1
      %p97 = por %p95, %p96
      %p98 = scmp.ne.s32.totalorder %s90, %s93
      %p99 = scmp.eq.s32.totalorder %s16, 0
      %p100 = por %p98, %p99
      %p101 = scmp.ne.s32.totalorder %s90, %s93
      %p102 = scmp.eq.s32.totalorder %s21, 1
      %p103 = por %p101, %p102
      %p104 = scmp.ne.s32.totalorder %s93, %s94
      %p105 = scmp.eq.s32.totalorder %s21, 0
      %p106 = por %p104, %p105
      %p107 = scmp.ne.s32.totalorder %s93, %s94
      %p108 = scmp.eq.s32.totalorder %s22, 1
      %p109 = por %p107, %p108
      %p111 = scmp.ne.s32.totalorder %s94, %s110
      %p112 = scmp.eq.s32.totalorder %s22, 0
      %p113 = por %p111, %p112
      %s114 = ssub.s32 %s24, %s31
      %s115 = ssub.s32 %s23, %s35
      %s116 = sor.u32 %s114, %s115
      %p117 = scmp.eq.s32.totalorder %s116, 0
      %s119 = sadd.s32 %s118, 1
      %s120 = scalar_select %p117, %s118, %s119
      %p123 = pneg %p117
      %p124 = scmp.eq.s32.totalorder %s16, 1
      %p125 = por %p123, %p124
      %p126 = scmp.ne.s32.totalorder %s118, %s121
      %p127 = scmp.eq.s32.totalorder %s16, 0
      %p128 = por %p126, %p127
      %p129 = scmp.ne.s32.totalorder %s118, %s121
      %p130 = scmp.eq.s32.totalorder %s21, 1
      %p131 = por %p129, %p130
      %p132 = scmp.ne.s32.totalorder %s121, %s122
      %p133 = scmp.eq.s32.totalorder %s21, 0
      %p134 = por %p132, %p133
      %p135 = scmp.ne.s32.totalorder %s121, %s122
      %p136 = scmp.eq.s32.totalorder %s22, 1
      %p137 = por %p135, %p136
      %p139 = scmp.ne.s32.totalorder %s122, %s138
      %p140 = scmp.eq.s32.totalorder %s22, 0
      %p141 = por %p139, %p140
      %p142 = scmp.le.s32.totalorder 1, %s16
      %p143 = scmp.lt.s32.totalorder %s16, 3
      %p144 = pnand %p142, %p143
      %p145 = pneg %p144
      // Predicated region
      $region9: #{tpu_custom_call.1} parent=5 // pred_check
        _
      $region10: #{tpu_custom_call.1} parent=5 // pred_check_branch
        %147 = sbr.rel (%p144) target = $region12
      $region11: #{tpu_custom_call.1} parent=5 // pred_region
        %s148 = ssub.s32 %s16, 1
        // Predicated region
        $region13: #{tpu_custom_call.1} parent=11 // pred_check
          %p149 = pneg %p80
        $region14: #{tpu_custom_call.1} parent=11 // pred_check_branch
          %151 = sbr.rel (%p149) target = $region16
        $region15: #{tpu_custom_call.1} parent=11 // pred_region
          %s153 = ssub.s32 512, 512
          %154 = vsyncadd [#allocation6], %s153
          %s155 = smul.addr %s25, 128
          %s156 = scalar_lea.hbm %s1, %s155
          %s157 = sshll.u32 [#allocation5], 4
          %s158 = int_to_ptr.vmem [resolvable:$true] %s157
          %163 = dma.hbm_to_vmem [thread:$0]  %s156, 512, %s158, [#allocation6], 128, 128, 8
        $region16: #{tpu_custom_call.1} parent=11 // pred_fallthru
          _
        // Predicated region
        $region17: #{tpu_custom_call.1} parent=11 // pred_check
          %p164 = pneg %p106
        $region18: #{tpu_custom_call.1} parent=11 // pred_check_branch
          %166 = sbr.rel (%p164) target = $region20
        $region19: #{tpu_custom_call.1} parent=11 // pred_region
          %p167 = scmp.lt.s32.totalorder %s25, 0
          %s168 = scalar_select %p167, %s25, 0
          %s169 = scalar_lea.vmem %s2, %s168
        $region20: #{tpu_custom_call.1} parent=11 // pred_fallthru
          _
      $region12: #{tpu_custom_call.1} parent=5 // pred_fallthru
        _
      %p170 = scmp.lt.s32.totalorder %s16, 2
      // Predicated region
      $region21: #{tpu_custom_call.1} parent=5 // pred_check
        %p171 = pneg %p170
      $region22: #{tpu_custom_call.1} parent=5 // pred_check_branch
        %173 = sbr.rel (%p171) target = $region24
      $region23: #{tpu_custom_call.1} parent=5 // pred_region
        // Predicated region
        $region25: #{tpu_custom_call.1} parent=23 // pred_check
          %p174 = pneg %p48
        $region26: #{tpu_custom_call.1} parent=23 // pred_check_branch
          %176 = sbr.rel (%p174) target = $region28
        $region27: #{tpu_custom_call.1} parent=23 // pred_region
          %s177 = sand.u32 %s38, 1
          %s178 = scalar_lea.sflag [#allocation3], %s177
          %s179 = sand.u32 %s38, 1
          %s180 = smul.addr %s179, 8
          %s181 = scalar_lea.vmem [#allocation2], %s180
          %s183 = ssub.s32 128, 128
          %184 = vsyncadd %s178, %s183
          %s185 = smul.addr %s24, 128
          %s186 = scalar_lea.hbm %s0, %s185
          %s188 = sshll.u32 %s181, 4
          %s189 = int_to_ptr.vmem [resolvable:$true] %s188
          %191 = dma.hbm_to_vmem [thread:$0]  %s186, 128, %s189, %s178
        $region28: #{tpu_custom_call.1} parent=23 // pred_fallthru
          _
      $region24: #{tpu_custom_call.1} parent=5 // pred_fallthru
        _
      %p192 = scmp.le.s32.totalorder 1, %s16
      %p193 = scmp.lt.s32.totalorder %s16, 3
      %p194 = pnand %p192, %p193
      %p195 = pneg %p194
      // Predicated region
      $region29: #{tpu_custom_call.1} parent=5 // pred_check
        _
      $region30: #{tpu_custom_call.1} parent=5 // pred_check_branch
        %197 = sbr.rel (%p194) target = $region32
      $region31: #{tpu_custom_call.1} parent=5 // pred_region
        %s198 = ssub.s32 %s16, 1
        %s199 = sand.u32 %s41, 1
        %s200 = scalar_lea.sflag [#allocation3], %s199
        %s201 = sand.u32 %s41, 1
        %s202 = smul.addr %s201, 8
        %s203 = scalar_lea.vmem [#allocation2], %s202
        // Predicated region
        $region33: #{tpu_custom_call.1} parent=31 // pred_check
          %p204 = pneg %p54
        $region34: #{tpu_custom_call.1} parent=31 // pred_check_branch
          %206 = sbr.rel (%p204) target = $region36
        $region35: #{tpu_custom_call.1} parent=31 // pred_region
          %207 = dma.done %s200, 128
        $region36: #{tpu_custom_call.1} parent=31 // pred_fallthru
          _
        // Predicated region
        $region37: #{tpu_custom_call.1} parent=31 // pred_check
          %p208 = pneg %p80
        $region38: #{tpu_custom_call.1} parent=31 // pred_check_branch
          %210 = sbr.rel (%p208) target = $region40
        $region39: #{tpu_custom_call.1} parent=31 // pred_region
          %211 = dma.done [#allocation6], 512
        $region40: #{tpu_custom_call.1} parent=31 // pred_fallthru
          _
        %s212 = sand.u32 %s41, 1
        %s213 = scalar_lea.sflag [#allocation3], %s212
        %s214 = sand.u32 %s41, 1
        %s215 = smul.addr %s214, 8
        %s216 = scalar_lea.vmem [#allocation2], %s215
        %p217 = pneg %p54
        %p218 = pneg %p51
        %p219 = pneg %p80
        %p220 = pneg %p77
        %p221 = scmp.lt.s32.totalorder %s25, 0
        %s222 = scalar_select %p221, %s25, 0
        %s223 = scalar_lea.vmem %s2, %s222
        %p224 = pneg %p106
        %p225 = pneg %p103
        %p226 = pneg %p134
        %p227 = pneg %p131
        %s228 = sand.u32 %s121, 1
        %s229 = scalar_lea.sflag [#allocation4], %s228
        %s230 = sand.u32 %s121, 1
        %s231 = smul.addr %s230, 8
        %s232 = scalar_lea.vmem [#allocation7], %s231
        %p233 = scmp.lt.s32.totalorder %s25, 0
        %s234 = scalar_select %p233, %s25, 0
        %s235 = scalar_lea.vmem %s2, %s234
        %v236 = vld [vmem:[%s203] sm:$0xff]
        %v237 = vld [vmem:[#allocation5] sm:$0xff]
        %v238 = vld [vmem:[#allocation5 + $0x8] sm:$0xff]
        %v239 = vld [vmem:[#allocation5 + $0x10] sm:$0xff]
        %v240 = vld [vmem:[#allocation5 + $0x18] sm:$0xff]
        %v241 = vld [vmem:[%s235] sm:$0x1]
        %v243 = vlaneseq
        %v244 = vshrl.u32 %v243, 7
        %v245 = vsub.s32 0, %v244
        %v246 = vrot.slane %v241, %v245
        %vm248 = vcmask 261120
        %v250 = vsel %vm248, %v236, 0
        %252 = vmatprep.subr.mxu0 0.0
        %253 = vmatpush1.msra.mxu0 0.0
        %254 = vmatprep.subr.mxu0 0.0
        %255 = vmatpush1.msra.mxu0 0.0
        %256 = vmatprep.subr.mxu0 0.0
        %257 = vmatpush1.msra.mxu0 0.0
        %258 = vmatprep.subr.mxu0 0.0
        %259 = vmatpush1.msra.mxu0 0.0
        %260 = vmatprep.subr.mxu0 0.0
        %261 = vmatpush1.msra.mxu0 0.0
        %262 = vmatprep.subr.mxu0 0.0
        %263 = vmatpush1.msra.mxu0 0.0
        %264 = vmatprep.subr.mxu0 0.0
        %265 = vmatpush1.msra.mxu0 0.0
        %266 = vmatprep.subr.mxu0 0.0
        %267 = vmatpush1.msra.mxu0 0.0
        %268 = vmatprep.subr.mxu0 0.0
        %269 = vmatpush1.msra.mxu0 0.0
        %270 = vmatprep.subr.mxu0 0.0
        %271 = vmatpush1.msra.mxu0 0.0
        %272 = vmatprep.subr.mxu0 0.0
        %273 = vmatpush1.msra.mxu0 0.0
        %274 = vmatprep.subr.mxu0 0.0
        %275 = vmatpush1.msra.mxu0 0.0
        %276 = vmatprep.subr.mxu0 0.0
        %277 = vmatpush1.msra.mxu0 %v240
        %278 = vmatprep.subr.mxu0 0.0
        %279 = vmatpush1.msra.mxu0 %v239
        %280 = vmatprep.subr.mxu0 0.0
        %281 = vmatpush1.msra.mxu0 %v238
        %282 = vmatprep.subr.mxu0 0.0
        %283 = vmatpush1.msra.mxu0 %v237
        %284 = vmatprep.subr.mxu0 0.0
        %285 = vmatpush2.msra.mxu0 0.0
        %286 = vmatprep.subr.mxu0 0.0
        %287 = vmatpush2.msra.mxu0 0.0
        %288 = vmatprep.subr.mxu0 0.0
        %289 = vmatpush2.msra.mxu0 0.0
        %290 = vmatprep.subr.mxu0 0.0
        %291 = vmatpush2.msra.mxu0 0.0
        %292 = vmatprep.subr.mxu0 0.0
        %293 = vmatpush2.msra.mxu0 0.0
        %294 = vmatprep.subr.mxu0 0.0
        %295 = vmatpush2.msra.mxu0 0.0
        %296 = vmatprep.subr.mxu0 0.0
        %297 = vmatpush2.msra.mxu0 0.0
        %298 = vmatprep.subr.mxu0 0.0
        %299 = vmatpush2.msra.mxu0 0.0
        %300 = vmatprep.subr.mxu0 0.0
        %301 = vmatpush2.msra.mxu0 0.0
        %302 = vmatprep.subr.mxu0 0.0
        %303 = vmatpush2.msra.mxu0 0.0
        %304 = vmatprep.subr.mxu0 0.0
        %305 = vmatpush2.msra.mxu0 0.0
        %306 = vmatprep.subr.mxu0 0.0
        %307 = vmatpush2.msra.mxu0 0.0
        %308 = vmatprep.subr.mxu0 0.0
        %309 = vmatpush2.msra.mxu0 0.0
        %310 = vmatprep.subr.mxu0 0.0
        %311 = vmatpush2.msra.mxu0 0.0
        %312 = vmatprep.subr.mxu0 0.0
        %313 = vmatpush2.msra.mxu0 0.0
        %314 = vmatprep.subr.mxu0 0.0
        %315 = vmatpush2.msra.mxu0 0.0
        %316 = vmatprep.mubr.f32.mxu0 0.0
        %317 = vmatmul.mubr.f32.gmra.mxu0 %v250
        %v318 = vpop.f32.mrf.mxu0
        %v319 = vadd.f32 %v246, %v318
        %v320 = vpop.f32.mrf.mxu0
        %321 = vdwg.mxu0
        %v322 = vmul.f32 %v319, 0.5
        %v323 = vmul.f32 %v319, 0.70710677
        %v324 = verf.f32.pop %v323
        %v325 = vadd.f32 %v324, 1.0
        %v326 = vmul.f32 %v322, %v325
        %327 = vst [vmem:[%s232] sm:$0xff] %v326
        %s328 = sand.u32 %s121, 1
        %s329 = scalar_lea.sflag [#allocation4], %s328
        %s330 = sand.u32 %s121, 1
        %s331 = smul.addr %s330, 8
        %s332 = scalar_lea.vmem [#allocation7], %s331
        // Predicated region
        $region41: #{tpu_custom_call.1} parent=31 // pred_check
          %p333 = pneg %p131
        $region42: #{tpu_custom_call.1} parent=31 // pred_check_branch
          %335 = sbr.rel (%p333) target = $region44
        $region43: #{tpu_custom_call.1} parent=31 // pred_region
          %s337 = ssub.s32 128, 128
          %338 = vsyncadd %s329, %s337
          %s339 = sadd.s32 %s25, %s26
          %s340 = smul.addr %s339, 128
          %s341 = scalar_lea.hbm %s3, %s340
          %s343 = sshll.u32 %s332, 4
          %s344 = int_to_ptr.vmem [resolvable:$true] %s343
          %346 = dma.vmem_to_hbm [thread:$0]  %s344, 128, %s341, %s329
        $region44: #{tpu_custom_call.1} parent=31 // pred_fallthru
          _
      $region32: #{tpu_custom_call.1} parent=5 // pred_fallthru
        _
      %p347 = scmp.le.s32.totalorder 2, %s16
      // Predicated region
      $region45: #{tpu_custom_call.1} parent=5 // pred_check
        %p348 = pneg %p347
      $region46: #{tpu_custom_call.1} parent=5 // pred_check_branch
        %350 = sbr.rel (%p348) target = $region48
      $region47: #{tpu_custom_call.1} parent=5 // pred_region
        %s351 = ssub.s32 %s16, 2
        // Predicated region
        $region49: #{tpu_custom_call.1} parent=47 // pred_check
          %p352 = pneg %p137
        $region50: #{tpu_custom_call.1} parent=47 // pred_check_branch
          %354 = sbr.rel (%p352) target = $region52
        $region51: #{tpu_custom_call.1} parent=47 // pred_region
          %s355 = sand.u32 %s122, 1
          %s356 = scalar_lea.sflag [#allocation4], %s355
          %s357 = sand.u32 %s122, 1
          %s358 = smul.addr %s357, 8
          %s359 = scalar_lea.vmem [#allocation7], %s358
          %360 = dma.done %s356, 128
        $region52: #{tpu_custom_call.1} parent=47 // pred_fallthru
          _
      $region48: #{tpu_custom_call.1} parent=5 // pred_fallthru
        _
    $region6: #{tpu_custom_call.1} parent=1 // loop_footer
      %s20 = sadd.s32 1, %s16
    $region7: #{tpu_custom_call.1} parent=1 // loop_footer_branch
      %15 = sbr.rel target = $region3
    $region8: #{tpu_custom_call.1} parent=1 // loop_exit
      _
    %361 = vsyncpa [#allocation3], 1
    %s362 = scalar_lea.sflag [#allocation3], 1
    %363 = vsyncpa %s362, 1
    %364 = vsyncpa [#allocation6], 1
    %365 = vsyncpa [#allocation4], 1
    %s366 = scalar_lea.sflag [#allocation4], 1
    %367 = vsyncpa %s366, 1

</llo_original>
